<compile_context>
chip_gen: v6e
topology: v6e:2x2x1
jax: 0.10.0
libtpu: 0.0.40
codegen_flags: <defaults>
</compile_context>

<pallas_src>
import functools

import jax
import jax.numpy as jnp
import numpy as np
from jax.experimental import pallas as pl
from jax.experimental.pallas import tpu as pltpu


# ----------------------------------------------------------------------------
# Fused Pallas kernel: CVLinear -> CVSoftThreshold -> CVLinear
# ----------------------------------------------------------------------------

def _decoder_kernel(x_ref, w1_ref, w2_ref, theta_ref, o_ref, *, feat):
    x = x_ref[...]                                              # (tm, 2F) = [real | imag]

    # CVLinear #1 : one block-real matmul == complex matmul (no bias)
    y = jnp.dot(x, w1_ref[...], preferred_element_type=jnp.float32)   # (tm, 2F)

    # CVSoftThreshold in cat layout: pair lane j (real) with lane F+j (imag).
    # Rolling by F along the lane axis swaps the real/imag halves, so every lane sees its partner.
    y_sw = pltpu.roll(y, shift=feat, axis=1)
    mag = jnp.sqrt(y * y + y_sw * y_sw)                         # |z|, broadcast to both halves
    theta = theta_ref[0]
    b = jnp.maximum(mag - theta, 0.0)                           # relu(|z| - theta)
    z = (y / mag) * b                                           # matches torch: (part / |z|) * B

    # CVLinear #2
    o_ref[...] = jnp.dot(z, w2_ref[...], preferred_element_type=jnp.float32)


def _block_weight(wr, wi):
    """Build [[wr, wi], [-wi, wr]] so that [xr | xi] @ W == [yr | yi] of the complex product."""
    top = jnp.concatenate([wr, wi], axis=1)
    bot = jnp.concatenate([-wi, wr], axis=1)
    return jnp.concatenate([top, bot], axis=0)                  # (2F, 2F)


def decoder_forward(xr, xi, w1r, w1i, w2r, w2i, theta, *, tm=None):
    """Decoder forward.  xr/xi: (M, F) float32 (real/imag parts of the complex input)."""
    M, F = xr.shape
    x_cat = jnp.concatenate([xr, xi], axis=-1)                  # (M, 2F), lane-dense
    w1 = _block_weight(w1r, w1i)
    w2 = _block_weight(w2r, w2i)
    theta_arr = jnp.reshape(theta, (1,)).astype(jnp.float32)

    if tm is None:
        tm = min(M, 256)
    assert M % tm == 0 and tm % 8 == 0

    out = pl.pallas_call(
        functools.partial(_decoder_kernel, feat=F),
        grid_spec=pltpu.PrefetchScalarGridSpec(
            num_scalar_prefetch=0,
            grid=(M // tm,),
            in_specs=[
                pl.BlockSpec((tm, 2 * F), lambda i: (i, 0)),            # activation row tile
                pl.BlockSpec((2 * F, 2 * F), lambda i: (0, 0)),         # resident weight 1
                pl.BlockSpec((2 * F, 2 * F), lambda i: (0, 0)),         # resident weight 2
                pl.BlockSpec(memory_space=pltpu.MemorySpace.SMEM),      # theta scalar
            ],
            out_specs=pl.BlockSpec((tm, 2 * F), lambda i: (i, 0)),
        ),
        out_shape=jax.ShapeDtypeStruct((M, 2 * F), jnp.float32),
        compiler_params=pltpu.CompilerParams(
            dimension_semantics=("parallel",),     # shard row tiles across TCs (v7x megacore)
            vmem_limit_bytes=16 * 1024 * 1024,     # explicit budget; safe on v7x's 64 MiB VMEM
        ),
    )(x_cat, w1, w2, theta_arr)

    return out[:, :F], out[:, F:]


# ----------------------------------------------------------------------------
# Pure-JAX complex64 reference (mirrors the PyTorch forward)
# ----------------------------------------------------------------------------

def _ref_decoder(x, w1r, w1i, w2r, w2i, theta):
    hp = functools.partial(jnp.matmul, precision=jax.lax.Precision.HIGHEST)

    def cvlin(z, wr, wi):
        rr = hp(jnp.real(z), wr) - hp(jnp.imag(z), wi)
        ii = hp(jnp.real(z), wi) + hp(jnp.imag(z), wr)
        return rr + 1j * ii

    def soft(z):
        mag = jnp.sqrt(jnp.real(z) ** 2 + jnp.imag(z) ** 2)
        b = jnp.maximum(mag - theta, 0.0)
        ro = (jnp.real(z) / mag) * b
        io = (jnp.imag(z) / mag) * b
        return ro + 1j * io

    return cvlin(soft(cvlin(x, w1r, w1i)), w2r, w2i)


# ----------------------------------------------------------------------------
# main
# ----------------------------------------------------------------------------

if __name__ == "__main__":
    # 2D complex input (M, F): the einsum 'ij,ij->ij' in CVSoftThreshold implies a 2D input.
    M, F = 128, 64          # batch rows x out_features; 2F = 128 -> fully lane-dense tiles

    key = jax.random.PRNGKey(0)
    k = jax.random.split(key, 6)
    xr = jax.random.normal(k[0], (M, F), jnp.float32)
    xi = jax.random.normal(k[1], (M, F), jnp.float32)
    w1r = jax.random.normal(k[2], (F, F), jnp.float32) * 0.1
    w1i = jax.random.normal(k[3], (F, F), jnp.float32) * 0.1
    w2r = jax.random.normal(k[4], (F, F), jnp.float32) * 0.1
    w2i = jax.random.normal(k[5], (F, F), jnp.float32) * 0.1
    theta = jnp.array([0.1], jnp.float32)   # CVSoftThreshold.theta (learned scalar; init is 0)

    fwd = jax.jit(functools.partial(decoder_forward, tm=64))   # grid=(2,), parallel over rows
    yr, yi = fwd(xr, xi, w1r, w1i, w2r, w2i, theta)
    yr = jax.block_until_ready(yr)
    yi = jax.block_until_ready(yi)

    # Cross-check against a pure-JAX complex64 reference of the PyTorch forward.
    ref = _ref_decoder(xr.astype(jnp.complex64) + 1j * xi.astype(jnp.complex64),
                       w1r, w1i, w2r, w2i, theta)
    np.testing.assert_allclose(np.asarray(yr), np.real(np.asarray(ref)), rtol=1e-2, atol=1e-2)
    np.testing.assert_allclose(np.asarray(yi), np.imag(np.asarray(ref)), rtol=1e-2, atol=1e-2)

    print("KERNEL_OK")
</pallas_src>

<mosaic_0001>
module attributes {stable_mosaic.version = 11 : i64} {
  func.func @_decoder_kernel(%arg0: i32, %arg1: memref<64x128xf32, #tpu.memory_space<vmem>>, %arg2: memref<128x128xf32, #tpu.memory_space<vmem>>, %arg3: memref<128x128xf32, #tpu.memory_space<vmem>>, %arg4: memref<1xf32, #tpu.memory_space<smem>>, %arg5: memref<64x128xf32, #tpu.memory_space<vmem>>) attributes {dimension_semantics = [#tpu.dimension_semantics<parallel>], iteration_bounds = array<i64: 2>, scalar_prefetch = 0 : i64, scratch_operands = 0 : i64, tpu.core_type = #tpu.core_type<tc>, window_params = [{transform_indices = @transform_0, window_bounds = array<i64: 64, 128>}, {pipeline_mode = #tpu.pipeline_mode<synchronous>, transform_indices = @transform_1, window_bounds = array<i64: 128, 128>}, {pipeline_mode = #tpu.pipeline_mode<synchronous>, transform_indices = @transform_2, window_bounds = array<i64: 128, 128>}, {transform_indices = @transform_3, window_bounds = array<i64: 1>}, {transform_indices = @transform_4, window_bounds = array<i64: 64, 128>}]} {
    %c0 = arith.constant 0 : index
    %c0_0 = arith.constant 0 : index
    %0 = vector.load %arg1[%c0, %c0_0] : memref<64x128xf32, #tpu.memory_space<vmem>>, vector<64x128xf32>
    %c0_1 = arith.constant 0 : index
    %c0_2 = arith.constant 0 : index
    %1 = vector.load %arg2[%c0_1, %c0_2] : memref<128x128xf32, #tpu.memory_space<vmem>>, vector<128x128xf32>
    %cst = arith.constant dense<0.000000e+00> : vector<64x128xf32>
    %2 = tpu.matmul %0, %1, %cst {dimension_numbers = #tpu.dot_dimension_numbers<[1], [0], [0], [1], [0, 0, 1, 1], [], []>} : vector<64x128xf32>, vector<128x128xf32>, vector<64x128xf32> -> vector<64x128xf32>
    %c64_i32 = arith.constant 64 : i32
    %3 = tpu.dynamic_rotate %2 by %c64_i32 dim 1 : vector<64x128xf32>, i32 -> vector<64x128xf32>
    %4 = arith.mulf %2, %2 : vector<64x128xf32>
    %5 = arith.mulf %3, %3 : vector<64x128xf32>
    %6 = arith.addf %4, %5 : vector<64x128xf32>
    %7 = math.sqrt %6 : vector<64x128xf32>
    %c0_3 = arith.constant 0 : index
    %8 = memref.load %arg4[%c0_3] : memref<1xf32, #tpu.memory_space<smem>>
    %9 = vector.broadcast %8 : f32 to vector<64x128xf32>
    %10 = arith.subf %7, %9 : vector<64x128xf32>
    %cst_4 = arith.constant 0.000000e+00 : f32
    %11 = vector.broadcast %cst_4 : f32 to vector<64x128xf32>
    %12 = arith.maximumf %10, %11 : vector<64x128xf32>
    %13 = arith.divf %2, %7 : vector<64x128xf32>
    %14 = arith.mulf %13, %12 : vector<64x128xf32>
    %c0_5 = arith.constant 0 : index
    %c0_6 = arith.constant 0 : index
    %15 = vector.load %arg3[%c0_5, %c0_6] : memref<128x128xf32, #tpu.memory_space<vmem>>, vector<128x128xf32>
    %cst_7 = arith.constant dense<0.000000e+00> : vector<64x128xf32>
    %16 = tpu.matmul %14, %15, %cst_7 {dimension_numbers = #tpu.dot_dimension_numbers<[1], [0], [0], [1], [0, 0, 1, 1], [], []>} : vector<64x128xf32>, vector<128x128xf32>, vector<64x128xf32> -> vector<64x128xf32>
    %c0_8 = arith.constant 0 : index
    %c0_9 = arith.constant 0 : index
    %17 = vector.load %arg5[%c0_8, %c0_9] : memref<64x128xf32, #tpu.memory_space<vmem>>, vector<64x128xf32>
    tpu.vector_store %arg5[%c0_8, %c0_9], %16 {strides = array<i32>} : memref<64x128xf32, #tpu.memory_space<vmem>>, vector<64x128xf32>,
    return
  }
  func.func @transform_0(%arg0: i32) -> (i32, i32) {
    %c0_i32 = arith.constant 0 : i32
    %c0_i32_0 = arith.constant 0 : i32
    return %arg0, %c0_i32 : i32, i32
  }
  func.func @transform_1(%arg0: i32) -> (i32, i32) {
    %c0_i32 = arith.constant 0 : i32
    %c0_i32_0 = arith.constant 0 : i32
    %c0_i32_1 = arith.constant 0 : i32
    return %c0_i32, %c0_i32_0 : i32, i32
  }
  func.func @transform_2(%arg0: i32) -> (i32, i32) {
    %c0_i32 = arith.constant 0 : i32
    %c0_i32_0 = arith.constant 0 : i32
    %c0_i32_1 = arith.constant 0 : i32
    return %c0_i32, %c0_i32_0 : i32, i32
  }
  func.func @transform_3(%arg0: i32) -> i32 {
    %c0_i32 = arith.constant 0 : i32
    %c0_i32_0 = arith.constant 0 : i32
    return %c0_i32 : i32
  }
  func.func @transform_4(%arg0: i32) -> (i32, i32) {
    %c0_i32 = arith.constant 0 : i32
    %c0_i32_0 = arith.constant 0 : i32
    return %arg0, %c0_i32 : i32, i32
  }
}

</mosaic_0001>

<llo_original>
// kernel: neg.2
$region0: #{neg.2}
  #allocation0 [shape = 's32[1]{0}', space=sflag, size = 0x4, scoped, tag = 'scoped memory for neg.2']
  %s0 = inlined_call_operand.vmem [shape: f32[64,64], index: 0, kind: input, shape index: {}]
  %s1 = inlined_call_operand.vmem [shape: f32[64,64], index: 1, kind: output, shape index: {}]
  %v2 = vld [vmem:[%s0] sm:$0xff]
  %3 = xla_tuple %v2
  %4 = xla_tuple %3
  %v5 = vxor.u32 %v2, 2147483648
  %6 = xla_tuple %v5
  %7 = vst [vmem:[%s1] sm:$0xff] %v5
  %s8 = scalar_lea.vmem %s0, 8
  %v9 = vld [vmem:[%s8] sm:$0xff]
  %10 = xla_tuple %v9
  %11 = xla_tuple %10
  %v12 = vxor.u32 %v9, 2147483648
  %13 = xla_tuple %v12
  %s14 = scalar_lea.vmem %s1, 8
  %15 = vst [vmem:[%s14] sm:$0xff] %v12
  %s16 = scalar_lea.vmem %s0, 16
  %v17 = vld [vmem:[%s16] sm:$0xff]
  %18 = xla_tuple %v17
  %19 = xla_tuple %18
  %v20 = vxor.u32 %v17, 2147483648
  %21 = xla_tuple %v20
  %s22 = scalar_lea.vmem %s1, 16
  %23 = vst [vmem:[%s22] sm:$0xff] %v20
  %s24 = scalar_lea.vmem %s0, 24
  %v25 = vld [vmem:[%s24] sm:$0xff]
  %26 = xla_tuple %v25
  %27 = xla_tuple %26
  %v28 = vxor.u32 %v25, 2147483648
  %29 = xla_tuple %v28
  %s30 = scalar_lea.vmem %s1, 24
  %31 = vst [vmem:[%s30] sm:$0xff] %v28
  %s32 = scalar_lea.vmem %s0, 32
  %v33 = vld [vmem:[%s32] sm:$0xff]
  %34 = xla_tuple %v33
  %35 = xla_tuple %34
  %v36 = vxor.u32 %v33, 2147483648
  %37 = xla_tuple %v36
  %s38 = scalar_lea.vmem %s1, 32
  %39 = vst [vmem:[%s38] sm:$0xff] %v36
  %s40 = scalar_lea.vmem %s0, 40
  %v41 = vld [vmem:[%s40] sm:$0xff]
  %42 = xla_tuple %v41
  %43 = xla_tuple %42
  %v44 = vxor.u32 %v41, 2147483648
  %45 = xla_tuple %v44
  %s46 = scalar_lea.vmem %s1, 40
  %47 = vst [vmem:[%s46] sm:$0xff] %v44
  %s48 = scalar_lea.vmem %s0, 48
  %v49 = vld [vmem:[%s48] sm:$0xff]
  %50 = xla_tuple %v49
  %51 = xla_tuple %50
  %v52 = vxor.u32 %v49, 2147483648
  %53 = xla_tuple %v52
  %s54 = scalar_lea.vmem %s1, 48
  %55 = vst [vmem:[%s54] sm:$0xff] %v52
  %s56 = scalar_lea.vmem %s0, 56
  %v57 = vld [vmem:[%s56] sm:$0xff]
  %58 = xla_tuple %v57
  %59 = xla_tuple %58
  %v60 = vxor.u32 %v57, 2147483648
  %61 = xla_tuple %v60
  %s62 = scalar_lea.vmem %s1, 56
  %63 = vst [vmem:[%s62] sm:$0xff] %v60

// kernel: decoder_forward.1
$region0: #{decoder_forward.1}
  #allocation0 [shape = 'u32[]', space=smem, size = 0x4, offset = 0x4, fixed_abs, tag = 'smem constant byte address 0x4 - core index']
  #allocation1 [shape = 'u32[144,128]{1,0:T(1,128)}', space=vmem, size = 0x12000, scoped, tag = 'internal scratch']
  #allocation2 [shape = 'f32[1]{0:T(128)S(6)}', space=smem, size = 0x200, scoped, tag = 'scoped memory for decoder_forward.1']
  %s0 = inlined_call_operand.vmem [shape: f32[128,128], index: 0, kind: input, shape index: {}]
  %s1 = inlined_call_operand.vmem [shape: f32[128,128], index: 1, kind: input, shape index: {}]
  %s2 = inlined_call_operand.vmem [shape: f32[128,128], index: 2, kind: input, shape index: {}]
  %s3 = inlined_call_operand.<no memory space> [shape: f32[1], index: 3, kind: input, shape index: {}]
  %s4 = inlined_call_operand.vmem [shape: f32[128,128], index: 4, kind: output, shape index: {}]
  %s5 = sld [smem:[#allocation0]]
  $region49: #{decoder_forward.1} parent=0
    _
  %s7 = ssub.s32 1, %s5
  %s8 = scalar_select 0, %s7, %s5
  %9 = sst [smem:[#allocation2]] %s3
  loop: start=0, step=1, limit=4
  $region2: #{decoder_forward.1} parent=0 // loop_pre_header
    _
  $region3: #{decoder_forward.1} parent=0 // loop_header
    %s11 = sphi 0, %s15
    %p12 = scmp.ge.s32.totalorder %s11, 4
    %s21 = sphi 0, %s23
    %s24 = sphi 0, %s21
    %s25 = sphi 0, %s24
    %s41 = sphi 0, %s25
    %s45 = sphi 0, %s45
    %s47 = sphi 0, %s45
    %s48 = sphi 0, %s47
    %s62 = sphi 0, %s48
    %s66 = sphi 0, %s66
    %s68 = sphi 0, %s66
    %s69 = sphi 0, %s68
    %s83 = sphi 0, %s69
    %s87 = sphi 0, %s87
    %s89 = sphi 0, %s87
    %s90 = sphi 0, %s89
    %s104 = sphi 0, %s90
    %s110 = sphi 0, %s112
    %s113 = sphi 0, %s110
    %s114 = sphi 0, %s113
    %s130 = sphi 0, %s114
  $region4: #{decoder_forward.1} parent=0 // loop_header_branch
    %14 = sbr.rel (%p12) target = $region8
  $region5: #{decoder_forward.1} parent=0 // loop_body
    %s16 = ssub.s32 %s11, 1
    %s17 = ssub.s32 %s11, 2
    %s18 = sadd.s32 %s11, 1
    %s19 = ssub.s32 %s11, %s18
    %p20 = scmp.eq.s32.totalorder %s19, 0
    %s22 = sadd.s32 %s21, 1
    %s23 = scalar_select %p20, %s21, %s22
    %p26 = pneg %p20
    %p27 = scmp.eq.s32.totalorder %s11, 1
    %p28 = por %p26, %p27
    %p29 = scmp.ne.s32.totalorder %s21, %s24
    %p30 = scmp.eq.s32.totalorder %s11, 0
    %p31 = por %p29, %p30
    %p32 = scmp.ne.s32.totalorder %s21, %s24
    %p33 = scmp.eq.s32.totalorder %s16, 1
    %p34 = por %p32, %p33
    %p35 = scmp.ne.s32.totalorder %s24, %s25
    %p36 = scmp.eq.s32.totalorder %s16, 0
    %p37 = por %p35, %p36
    %p38 = scmp.ne.s32.totalorder %s24, %s25
    %p39 = scmp.eq.s32.totalorder %s17, 1
    %p40 = por %p38, %p39
    %p42 = scmp.ne.s32.totalorder %s25, %s41
    %p43 = scmp.eq.s32.totalorder %s17, 0
    %p44 = por %p42, %p43
    %s46 = sadd.s32 %s45, 1
    %p49 = scmp.eq.s32.totalorder %s11, 1
    %p50 = scmp.ne.s32.totalorder %s45, %s47
    %p51 = scmp.eq.s32.totalorder %s11, 0
    %p52 = por %p50, %p51
    %p53 = scmp.ne.s32.totalorder %s45, %s47
    %p54 = scmp.eq.s32.totalorder %s16, 1
    %p55 = por %p53, %p54
    %p56 = scmp.ne.s32.totalorder %s47, %s48
    %p57 = scmp.eq.s32.totalorder %s16, 0
    %p58 = por %p56, %p57
    %p59 = scmp.ne.s32.totalorder %s47, %s48
    %p60 = scmp.eq.s32.totalorder %s17, 1
    %p61 = por %p59, %p60
    %p63 = scmp.ne.s32.totalorder %s48, %s62
    %p64 = scmp.eq.s32.totalorder %s17, 0
    %p65 = por %p63, %p64
    %s67 = sadd.s32 %s66, 1
    %p70 = scmp.eq.s32.totalorder %s11, 1
    %p71 = scmp.ne.s32.totalorder %s66, %s68
    %p72 = scmp.eq.s32.totalorder %s11, 0
    %p73 = por %p71, %p72
    %p74 = scmp.ne.s32.totalorder %s66, %s68
    %p75 = scmp.eq.s32.totalorder %s16, 1
    %p76 = por %p74, %p75
    %p77 = scmp.ne.s32.totalorder %s68, %s69
    %p78 = scmp.eq.s32.totalorder %s16, 0
    %p79 = por %p77, %p78
    %p80 = scmp.ne.s32.totalorder %s68, %s69
    %p81 = scmp.eq.s32.totalorder %s17, 1
    %p82 = por %p80, %p81
    %p84 = scmp.ne.s32.totalorder %s69, %s83
    %p85 = scmp.eq.s32.totalorder %s17, 0
    %p86 = por %p84, %p85
    %s88 = sadd.s32 %s87, 1
    %p91 = scmp.eq.s32.totalorder %s11, 1
    %p92 = scmp.ne.s32.totalorder %s87, %s89
    %p93 = scmp.eq.s32.totalorder %s11, 0
    %p94 = por %p92, %p93
    %p95 = scmp.ne.s32.totalorder %s87, %s89
    %p96 = scmp.eq.s32.totalorder %s16, 1
    %p97 = por %p95, %p96
    %p98 = scmp.ne.s32.totalorder %s89, %s90
    %p99 = scmp.eq.s32.totalorder %s16, 0
    %p100 = por %p98, %p99
    %p101 = scmp.ne.s32.totalorder %s89, %s90
    %p102 = scmp.eq.s32.totalorder %s17, 1
    %p103 = por %p101, %p102
    %p105 = scmp.ne.s32.totalorder %s90, %s104
    %p106 = scmp.eq.s32.totalorder %s17, 0
    %p107 = por %p105, %p106
    %s108 = ssub.s32 %s11, %s18
    %p109 = scmp.eq.s32.totalorder %s108, 0
    %s111 = sadd.s32 %s110, 1
    %s112 = scalar_select %p109, %s110, %s111
    %p115 = pneg %p109
    %p116 = scmp.eq.s32.totalorder %s11, 1
    %p117 = por %p115, %p116
    %p118 = scmp.ne.s32.totalorder %s110, %s113
    %p119 = scmp.eq.s32.totalorder %s11, 0
    %p120 = por %p118, %p119
    %p121 = scmp.ne.s32.totalorder %s110, %s113
    %p122 = scmp.eq.s32.totalorder %s16, 1
    %p123 = por %p121, %p122
    %p124 = scmp.ne.s32.totalorder %s113, %s114
    %p125 = scmp.eq.s32.totalorder %s16, 0
    %p126 = por %p124, %p125
    %p127 = scmp.ne.s32.totalorder %s113, %s114
    %p128 = scmp.eq.s32.totalorder %s17, 1
    %p129 = por %p127, %p128
    %p131 = scmp.ne.s32.totalorder %s114, %s130
    %p132 = scmp.eq.s32.totalorder %s17, 0
    %p133 = por %p131, %p132
    %p134 = scmp.le.s32.totalorder 1, %s11
    %p135 = scmp.lt.s32.totalorder %s11, 3
    %p136 = pnand %p134, %p135
    %p137 = pneg %p136
    // Predicated region
    $region9: #{decoder_forward.1} parent=5 // pred_check
      _
    $region10: #{decoder_forward.1} parent=5 // pred_check_branch
      %139 = sbr.rel (%p136) target = $region12
    $region11: #{decoder_forward.1} parent=5 // pred_region
      %s140 = ssub.s32 %s11, 1
      // Predicated region
      $region13: #{decoder_forward.1} parent=11 // pred_check
        %p141 = pneg %p58
      $region14: #{decoder_forward.1} parent=11 // pred_check_branch
        %143 = sbr.rel (%p141) target = $region16
      $region15: #{decoder_forward.1} parent=11 // pred_region
        _
      $region16: #{decoder_forward.1} parent=11 // pred_fallthru
        _
      // Predicated region
      $region17: #{decoder_forward.1} parent=11 // pred_check
        %p144 = pneg %p79
      $region18: #{decoder_forward.1} parent=11 // pred_check_branch
        %146 = sbr.rel (%p144) target = $region20
      $region19: #{decoder_forward.1} parent=11 // pred_region
        _
      $region20: #{decoder_forward.1} parent=11 // pred_fallthru
        _
      // Predicated region
      $region21: #{decoder_forward.1} parent=11 // pred_check
        %p147 = pneg %p100
      $region22: #{decoder_forward.1} parent=11 // pred_check_branch
        %149 = sbr.rel (%p147) target = $region24
      $region23: #{decoder_forward.1} parent=11 // pred_region
        _
      $region24: #{decoder_forward.1} parent=11 // pred_fallthru
        _
    $region12: #{decoder_forward.1} parent=5 // pred_fallthru
      _
    %p150 = scmp.lt.s32.totalorder %s11, 2
    // Predicated region
    $region25: #{decoder_forward.1} parent=5 // pred_check
      %p151 = pneg %p150
    $region26: #{decoder_forward.1} parent=5 // pred_check_branch
      %153 = sbr.rel (%p151) target = $region28
    $region27: #{decoder_forward.1} parent=5 // pred_region
      // Predicated region
      $region29: #{decoder_forward.1} parent=27 // pred_check
        %p154 = pneg %p31
      $region30: #{decoder_forward.1} parent=27 // pred_check_branch
        %156 = sbr.rel (%p154) target = $region32
      $region31: #{decoder_forward.1} parent=27 // pred_region
        %s157 = smul.u32 8, %s11
        %p158 = scmp.lt.s32.totalorder %s157, 15
        %s159 = scalar_select %p158, %s157, 15
        %s160 = smul.addr %s159, 8
        %s161 = scalar_lea.vmem %s0, %s160
        %s162 = smul.u32 8, %s11
      $region32: #{decoder_forward.1} parent=27 // pred_fallthru
        _
    $region28: #{decoder_forward.1} parent=5 // pred_fallthru
      _
    %p163 = scmp.le.s32.totalorder 1, %s11
    %p164 = scmp.lt.s32.totalorder %s11, 3
    %p165 = pnand %p163, %p164
    %p166 = pneg %p165
    // Predicated region
    $region33: #{decoder_forward.1} parent=5 // pred_check
      _
    $region34: #{decoder_forward.1} parent=5 // pred_check_branch
      %168 = sbr.rel (%p165) target = $region36
    $region35: #{decoder_forward.1} parent=5 // pred_region
      %s169 = ssub.s32 %s11, 1
      %s170 = smul.u32 8, %s16
      %p171 = scmp.lt.s32.totalorder %s170, 15
      %s172 = scalar_select %p171, %s170, 15
      %s173 = smul.addr %s172, 8
      %s174 = scalar_lea.vmem %s0, %s173
      %p175 = pneg %p37
      %p176 = pneg %p34
      %p177 = pneg %p58
      %p178 = pneg %p55
      %p179 = pneg %p79
      %p180 = pneg %p76
      %p181 = pneg %p100
      %p182 = pneg %p97
      %p183 = pneg %p126
      %p184 = pneg %p123
      %s185 = smul.u32 8, %s16
      %p186 = scmp.lt.s32.totalorder %s185, 15
      %s187 = scalar_select %p186, %s185, 15
      %s188 = smul.addr %s187, 8
      %s189 = scalar_lea.vmem %s4, %s188
      %s190 = smul.u32 8, %s16
      %p191 = scmp.lt.s32.totalorder %s190, 15
      %s192 = scalar_select %p191, %s190, 15
      %s193 = smul.addr %s192, 8
      %s194 = scalar_lea.vmem %s0, %s193
      %s195 = smul.u32 8, %s16
      %s196 = smul.u32 8, %s16
      %p197 = scmp.lt.s32.totalorder %s196, 15
      %s198 = scalar_select %p197, %s196, 15
      %s199 = smul.addr %s198, 8
      %s200 = scalar_lea.vmem %s4, %s199
      %s201 = smul.u32 8, %s16
      %v202 = vld [vmem:[%s194] sm:$0xff]
      %v203 = vld [vmem:[%s194 + $0x8] sm:$0xff]
      %v204 = vld [vmem:[%s194 + $0x10] sm:$0xff]
      %v205 = vld [vmem:[%s194 + $0x18] sm:$0xff]
      %v206 = vld [vmem:[%s194 + $0x20] sm:$0xff]
      %v207 = vld [vmem:[%s194 + $0x28] sm:$0xff]
      %v208 = vld [vmem:[%s194 + $0x30] sm:$0xff]
      %v209 = vld [vmem:[%s194 + $0x38] sm:$0xff]
      %v210 = vld [vmem:[%s1] sm:$0xff]
      %v211 = vld [vmem:[%s1 + $0x8] sm:$0xff]
      %v212 = vld [vmem:[%s1 + $0x10] sm:$0xff]
      %v213 = vld [vmem:[%s1 + $0x18] sm:$0xff]
      %v214 = vld [vmem:[%s1 + $0x20] sm:$0xff]
      %v215 = vld [vmem:[%s1 + $0x28] sm:$0xff]
      %v216 = vld [vmem:[%s1 + $0x30] sm:$0xff]
      %v217 = vld [vmem:[%s1 + $0x38] sm:$0xff]
      %v218 = vld [vmem:[%s1 + $0x40] sm:$0xff]
      %v219 = vld [vmem:[%s1 + $0x48] sm:$0xff]
      %v220 = vld [vmem:[%s1 + $0x50] sm:$0xff]
      %v221 = vld [vmem:[%s1 + $0x58] sm:$0xff]
      %v222 = vld [vmem:[%s1 + $0x60] sm:$0xff]
      %v223 = vld [vmem:[%s1 + $0x68] sm:$0xff]
      %v224 = vld [vmem:[%s1 + $0x70] sm:$0xff]
      %v225 = vld [vmem:[%s1 + $0x78] sm:$0xff]
      %226 = vmatprep.subr.mxu0 0.0
      %227 = vmatpush1.msra.mxu0 %v225
      %228 = vmatprep.subr.mxu0 0.0
      %229 = vmatpush1.msra.mxu0 %v224
      %230 = vmatprep.subr.mxu0 0.0
      %231 = vmatpush1.msra.mxu0 %v223
      %232 = vmatprep.subr.mxu0 0.0
      %233 = vmatpush1.msra.mxu0 %v222
      %234 = vmatprep.subr.mxu0 0.0
      %235 = vmatpush1.msra.mxu0 %v221
      %236 = vmatprep.subr.mxu0 0.0
      %237 = vmatpush1.msra.mxu0 %v220
      %238 = vmatprep.subr.mxu0 0.0
      %239 = vmatpush1.msra.mxu0 %v219
      %240 = vmatprep.subr.mxu0 0.0
      %241 = vmatpush1.msra.mxu0 %v218
      %242 = vmatprep.subr.mxu0 0.0
      %243 = vmatpush1.msra.mxu0 %v217
      %244 = vmatprep.subr.mxu0 0.0
      %245 = vmatpush1.msra.mxu0 %v216
      %246 = vmatprep.subr.mxu0 0.0
      %247 = vmatpush1.msra.mxu0 %v215
      %248 = vmatprep.subr.mxu0 0.0
      %249 = vmatpush1.msra.mxu0 %v214
      %250 = vmatprep.subr.mxu0 0.0
      %251 = vmatpush1.msra.mxu0 %v213
      %252 = vmatprep.subr.mxu0 0.0
      %253 = vmatpush1.msra.mxu0 %v212
      %254 = vmatprep.subr.mxu0 0.0
      %255 = vmatpush1.msra.mxu0 %v211
      %256 = vmatprep.subr.mxu0 0.0
      %257 = vmatpush1.msra.mxu0 %v210
      %258 = vmatprep.subr.mxu0 0.0
      %259 = vmatpush2.msra.mxu0 0.0
      %260 = vmatprep.subr.mxu0 0.0
      %261 = vmatpush2.msra.mxu0 0.0
      %262 = vmatprep.subr.mxu0 0.0
      %263 = vmatpush2.msra.mxu0 0.0
      %264 = vmatprep.subr.mxu0 0.0
      %265 = vmatpush2.msra.mxu0 0.0
      %266 = vmatprep.subr.mxu0 0.0
      %267 = vmatpush2.msra.mxu0 0.0
      %268 = vmatprep.subr.mxu0 0.0
      %269 = vmatpush2.msra.mxu0 0.0
      %270 = vmatprep.subr.mxu0 0.0
      %271 = vmatpush2.msra.mxu0 0.0
      %272 = vmatprep.subr.mxu0 0.0
      %273 = vmatpush2.msra.mxu0 0.0
      %274 = vmatprep.subr.mxu0 0.0
      %275 = vmatpush2.msra.mxu0 0.0
      %276 = vmatprep.subr.mxu0 0.0
      %277 = vmatpush2.msra.mxu0 0.0
      %278 = vmatprep.subr.mxu0 0.0
      %279 = vmatpush2.msra.mxu0 0.0
      %280 = vmatprep.subr.mxu0 0.0
      %281 = vmatpush2.msra.mxu0 0.0
      %282 = vmatprep.subr.mxu0 0.0
      %283 = vmatpush2.msra.mxu0 0.0
      %284 = vmatprep.subr.mxu0 0.0
      %285 = vmatpush2.msra.mxu0 0.0
      %286 = vmatprep.subr.mxu0 0.0
      %287 = vmatpush2.msra.mxu0 0.0
      %288 = vmatprep.subr.mxu0 0.0
      %289 = vmatpush2.msra.mxu0 0.0
      %290 = vmatprep.mubr.f32.mxu0 0.0
      %291 = vmatmul.mubr.f32.gmra.mxu0 %v202
      %v292 = vpop.f32.mrf.mxu0
      %v293 = vadd.f32 0.0, %v292
      %v294 = vpop.f32.mrf.mxu0
      %295 = vmatprep.mubr.f32.mxu0 0.0
      %296 = vmatmul.mubr.f32.gmra.mxu0 %v203
      %v297 = vpop.f32.mrf.mxu0
      %v298 = vadd.f32 0.0, %v297
      %v299 = vpop.f32.mrf.mxu0
      %300 = vmatprep.mubr.f32.mxu0 0.0
      %301 = vmatmul.mubr.f32.gmra.mxu0 %v204
      %v302 = vpop.f32.mrf.mxu0
      %v303 = vadd.f32 0.0, %v302
      %v304 = vpop.f32.mrf.mxu0
      %305 = vmatprep.mubr.f32.mxu0 0.0
      %306 = vmatmul.mubr.f32.gmra.mxu0 %v205
      %v307 = vpop.f32.mrf.mxu0
      %v308 = vadd.f32 0.0, %v307
      %v309 = vpop.f32.mrf.mxu0
      %310 = vmatprep.mubr.f32.mxu0 0.0
      %311 = vmatmul.mubr.f32.gmra.mxu0 %v206
      %v312 = vpop.f32.mrf.mxu0
      %v313 = vadd.f32 0.0, %v312
      %v314 = vpop.f32.mrf.mxu0
      %315 = vmatprep.mubr.f32.mxu0 0.0
      %316 = vmatmul.mubr.f32.gmra.mxu0 %v207
      %v317 = vpop.f32.mrf.mxu0
      %v318 = vadd.f32 0.0, %v317
      %v319 = vpop.f32.mrf.mxu0
      %320 = vmatprep.mubr.f32.mxu0 0.0
      %321 = vmatmul.mubr.f32.gmra.mxu0 %v208
      %v322 = vpop.f32.mrf.mxu0
      %v323 = vadd.f32 0.0, %v322
      %v324 = vpop.f32.mrf.mxu0
      %325 = vmatprep.mubr.f32.mxu0 0.0
      %326 = vmatmul.mubr.f32.gmra.mxu0 %v209
      %v327 = vpop.f32.mrf.mxu0
      %v328 = vadd.f32 0.0, %v327
      %v329 = vpop.f32.mrf.mxu0
      %330 = vdwg.mxu0
      %331 = vrot.lane.b32.xlu0 %v293, 64
      %v332 = vpop.permute.xlu0 %331
      %333 = vrot.lane.b32.xlu0 %v298, 64
      %v334 = vpop.permute.xlu0 %333
      %335 = vrot.lane.b32.xlu0 %v303, 64
      %v336 = vpop.permute.xlu0 %335
      %337 = vrot.lane.b32.xlu0 %v308, 64
      %v338 = vpop.permute.xlu0 %337
      %339 = vrot.lane.b32.xlu0 %v313, 64
      %v340 = vpop.permute.xlu0 %339
      %341 = vrot.lane.b32.xlu0 %v318, 64
      %v342 = vpop.permute.xlu0 %341
      %343 = vrot.lane.b32.xlu0 %v323, 64
      %v344 = vpop.permute.xlu0 %343
      %345 = vrot.lane.b32.xlu0 %v328, 64
      %v346 = vpop.permute.xlu0 %345
      %v347 = vmul.f32 %v293, %v293
      %v348 = vmul.f32 %v298, %v298
      %v349 = vmul.f32 %v303, %v303
      %v350 = vmul.f32 %v308, %v308
      %v351 = vmul.f32 %v313, %v313
      %v352 = vmul.f32 %v318, %v318
      %v353 = vmul.f32 %v323, %v323
      %v354 = vmul.f32 %v328, %v328
      %v355 = vmul.f32 %v332, %v332
      %v356 = vmul.f32 %v334, %v334
      %v357 = vmul.f32 %v336, %v336
      %v358 = vmul.f32 %v338, %v338
      %v359 = vmul.f32 %v340, %v340
      %v360 = vmul.f32 %v342, %v342
      %v361 = vmul.f32 %v344, %v344
      %v362 = vmul.f32 %v346, %v346
      %v363 = vadd.f32 %v347, %v355
      %v364 = vadd.f32 %v348, %v356
      %v365 = vadd.f32 %v349, %v357
      %v366 = vadd.f32 %v350, %v358
      %v367 = vadd.f32 %v351, %v359
      %v368 = vadd.f32 %v352, %v360
      %v369 = vadd.f32 %v353, %v361
      %v370 = vadd.f32 %v354, %v362
      %v371 = vrsqrt.pop %v363
      %v372 = vmul.f32 %v363, %v371
      %vm373 = vcmp.eq.f32.partialorder %v363, inf
      %v374 = vsel %vm373, %v363, %v372
      %vm375 = vcmp.eq.f32.partialorder %v363, 0.0
      %v376 = vand.u32 %v363, 2147483648
      %v377 = vsel %vm375, %v376, %v374
      %v378 = vrsqrt.pop %v364
      %v379 = vmul.f32 %v364, %v378
      %vm380 = vcmp.eq.f32.partialorder %v364, inf
      %v381 = vsel %vm380, %v364, %v379
      %vm382 = vcmp.eq.f32.partialorder %v364, 0.0
      %v383 = vand.u32 %v364, 2147483648
      %v384 = vsel %vm382, %v383, %v381
      %v385 = vrsqrt.pop %v365
      %v386 = vmul.f32 %v365, %v385
      %vm387 = vcmp.eq.f32.partialorder %v365, inf
      %v388 = vsel %vm387, %v365, %v386
      %vm389 = vcmp.eq.f32.partialorder %v365, 0.0
      %v390 = vand.u32 %v365, 2147483648
      %v391 = vsel %vm389, %v390, %v388
      %v392 = vrsqrt.pop %v366
      %v393 = vmul.f32 %v366, %v392
      %vm394 = vcmp.eq.f32.partialorder %v366, inf
      %v395 = vsel %vm394, %v366, %v393
      %vm396 = vcmp.eq.f32.partialorder %v366, 0.0
      %v397 = vand.u32 %v366, 2147483648
      %v398 = vsel %vm396, %v397, %v395
      %v399 = vrsqrt.pop %v367
      %v400 = vmul.f32 %v367, %v399
      %vm401 = vcmp.eq.f32.partialorder %v367, inf
      %v402 = vsel %vm401, %v367, %v400
      %vm403 = vcmp.eq.f32.partialorder %v367, 0.0
      %v404 = vand.u32 %v367, 2147483648
      %v405 = vsel %vm403, %v404, %v402
      %v406 = vrsqrt.pop %v368
      %v407 = vmul.f32 %v368, %v406
      %vm408 = vcmp.eq.f32.partialorder %v368, inf
      %v409 = vsel %vm408, %v368, %v407
      %vm410 = vcmp.eq.f32.partialorder %v368, 0.0
      %v411 = vand.u32 %v368, 2147483648
      %v412 = vsel %vm410, %v411, %v409
      %v413 = vrsqrt.pop %v369
      %v414 = vmul.f32 %v369, %v413
      %vm415 = vcmp.eq.f32.partialorder %v369, inf
      %v416 = vsel %vm415, %v369, %v414
      %vm417 = vcmp.eq.f32.partialorder %v369, 0.0
      %v418 = vand.u32 %v369, 2147483648
      %v419 = vsel %vm417, %v418, %v416
      %v420 = vrsqrt.pop %v370
      %v421 = vmul.f32 %v370, %v420
      %vm422 = vcmp.eq.f32.partialorder %v370, inf
      %v423 = vsel %vm422, %v370, %v421
      %vm424 = vcmp.eq.f32.partialorder %v370, 0.0
      %v425 = vand.u32 %v370, 2147483648
      %v426 = vsel %vm424, %v425, %v423
      %s427 = sld [smem:[#allocation2]]
      %v428 = vstv %s427
      %v429 = vsub.f32 %v377, %v428
      %v430 = vsub.f32 %v384, %v428
      %v431 = vsub.f32 %v391, %v428
      %v432 = vsub.f32 %v398, %v428
      %v433 = vsub.f32 %v405, %v428
      %v434 = vsub.f32 %v412, %v428
      %v435 = vsub.f32 %v419, %v428
      %v436 = vsub.f32 %v426, %v428
      %v437 = vmax.f32 %v429, 0.0
      %v438 = vmax.f32 %v430, 0.0
      %v439 = vmax.f32 %v431, 0.0
      %v440 = vmax.f32 %v432, 0.0
      %v441 = vmax.f32 %v433, 0.0
      %v442 = vmax.f32 %v434, 0.0
      %v443 = vmax.f32 %v435, 0.0
      %v444 = vmax.f32 %v436, 0.0
      %v445 = vrcp.pop %v377
      %v446 = vmul.f32 %v293, %v445
      %v447 = vrcp.pop %v384
      %v448 = vmul.f32 %v298, %v447
      %v449 = vrcp.pop %v391
      %v450 = vmul.f32 %v303, %v449
      %v451 = vrcp.pop %v398
      %v452 = vmul.f32 %v308, %v451
      %v453 = vrcp.pop %v405
      %v454 = vmul.f32 %v313, %v453
      %v455 = vrcp.pop %v412
      %v456 = vmul.f32 %v318, %v455
      %v457 = vrcp.pop %v419
      %v458 = vmul.f32 %v323, %v457
      %v459 = vrcp.pop %v426
      %v460 = vmul.f32 %v328, %v459
      %v461 = vmul.f32 %v446, %v437
      %v462 = vmul.f32 %v448, %v438
      %v463 = vmul.f32 %v450, %v439
      %v464 = vmul.f32 %v452, %v440
      %v465 = vmul.f32 %v454, %v441
      %v466 = vmul.f32 %v456, %v442
      %v467 = vmul.f32 %v458, %v443
      %v468 = vmul.f32 %v460, %v444
      %v469 = vld [vmem:[%s2] sm:$0xff]
      %v470 = vld [vmem:[%s2 + $0x8] sm:$0xff]
      %v471 = vld [vmem:[%s2 + $0x10] sm:$0xff]
      %v472 = vld [vmem:[%s2 + $0x18] sm:$0xff]
      %v473 = vld [vmem:[%s2 + $0x20] sm:$0xff]
      %v474 = vld [vmem:[%s2 + $0x28] sm:$0xff]
      %v475 = vld [vmem:[%s2 + $0x30] sm:$0xff]
      %v476 = vld [vmem:[%s2 + $0x38] sm:$0xff]
      %v477 = vld [vmem:[%s2 + $0x40] sm:$0xff]
      %v478 = vld [vmem:[%s2 + $0x48] sm:$0xff]
      %v479 = vld [vmem:[%s2 + $0x50] sm:$0xff]
      %v480 = vld [vmem:[%s2 + $0x58] sm:$0xff]
      %v481 = vld [vmem:[%s2 + $0x60] sm:$0xff]
      %v482 = vld [vmem:[%s2 + $0x68] sm:$0xff]
      %v483 = vld [vmem:[%s2 + $0x70] sm:$0xff]
      %v484 = vld [vmem:[%s2 + $0x78] sm:$0xff]
      %485 = vmatprep.subr.mxu0 0.0
      %486 = vmatpush1.msra.mxu0 %v484
      %487 = vmatprep.subr.mxu0 0.0
      %488 = vmatpush1.msra.mxu0 %v483
      %489 = vmatprep.subr.mxu0 0.0
      %490 = vmatpush1.msra.mxu0 %v482
      %491 = vmatprep.subr.mxu0 0.0
      %492 = vmatpush1.msra.mxu0 %v481
      %493 = vmatprep.subr.mxu0 0.0
      %494 = vmatpush1.msra.mxu0 %v480
      %495 = vmatprep.subr.mxu0 0.0
      %496 = vmatpush1.msra.mxu0 %v479
      %497 = vmatprep.subr.mxu0 0.0
      %498 = vmatpush1.msra.mxu0 %v478
      %499 = vmatprep.subr.mxu0 0.0
      %500 = vmatpush1.msra.mxu0 %v477
      %501 = vmatprep.subr.mxu0 0.0
      %502 = vmatpush1.msra.mxu0 %v476
      %503 = vmatprep.subr.mxu0 0.0
      %504 = vmatpush1.msra.mxu0 %v475
      %505 = vmatprep.subr.mxu0 0.0
      %506 = vmatpush1.msra.mxu0 %v474
      %507 = vmatprep.subr.mxu0 0.0
      %508 = vmatpush1.msra.mxu0 %v473
      %509 = vmatprep.subr.mxu0 0.0
      %510 = vmatpush1.msra.mxu0 %v472
      %511 = vmatprep.subr.mxu0 0.0
      %512 = vmatpush1.msra.mxu0 %v471
      %513 = vmatprep.subr.mxu0 0.0
      %514 = vmatpush1.msra.mxu0 %v470
      %515 = vmatprep.subr.mxu0 0.0
      %516 = vmatpush1.msra.mxu0 %v469
      %517 = vmatprep.subr.mxu0 0.0
      %518 = vmatpush2.msra.mxu0 0.0
      %519 = vmatprep.subr.mxu0 0.0
      %520 = vmatpush2.msra.mxu0 0.0
      %521 = vmatprep.subr.mxu0 0.0
      %522 = vmatpush2.msra.mxu0 0.0
      %523 = vmatprep.subr.mxu0 0.0
      %524 = vmatpush2.msra.mxu0 0.0
      %525 = vmatprep.subr.mxu0 0.0
      %526 = vmatpush2.msra.mxu0 0.0
      %527 = vmatprep.subr.mxu0 0.0
      %528 = vmatpush2.msra.mxu0 0.0
      %529 = vmatprep.subr.mxu0 0.0
      %530 = vmatpush2.msra.mxu0 0.0
      %531 = vmatprep.subr.mxu0 0.0
      %532 = vmatpush2.msra.mxu0 0.0
      %533 = vmatprep.subr.mxu0 0.0
      %534 = vmatpush2.msra.mxu0 0.0
      %535 = vmatprep.subr.mxu0 0.0
      %536 = vmatpush2.msra.mxu0 0.0
      %537 = vmatprep.subr.mxu0 0.0
      %538 = vmatpush2.msra.mxu0 0.0
      %539 = vmatprep.subr.mxu0 0.0
      %540 = vmatpush2.msra.mxu0 0.0
      %541 = vmatprep.subr.mxu0 0.0
      %542 = vmatpush2.msra.mxu0 0.0
      %543 = vmatprep.subr.mxu0 0.0
      %544 = vmatpush2.msra.mxu0 0.0
      %545 = vmatprep.subr.mxu0 0.0
      %546 = vmatpush2.msra.mxu0 0.0
      %547 = vmatprep.subr.mxu0 0.0
      %548 = vmatpush2.msra.mxu0 0.0
      %549 = vmatprep.mubr.f32.mxu0 0.0
      %550 = vmatmul.mubr.f32.gmra.mxu0 %v461
      %v551 = vpop.f32.mrf.mxu0
      %v552 = vadd.f32 0.0, %v551
      %v553 = vpop.f32.mrf.mxu0
      %554 = vmatprep.mubr.f32.mxu0 0.0
      %555 = vmatmul.mubr.f32.gmra.mxu0 %v462
      %v556 = vpop.f32.mrf.mxu0
      %v557 = vadd.f32 0.0, %v556
      %v558 = vpop.f32.mrf.mxu0
      %559 = vmatprep.mubr.f32.mxu0 0.0
      %560 = vmatmul.mubr.f32.gmra.mxu0 %v463
      %v561 = vpop.f32.mrf.mxu0
      %v562 = vadd.f32 0.0, %v561
      %v563 = vpop.f32.mrf.mxu0
      %564 = vmatprep.mubr.f32.mxu0 0.0
      %565 = vmatmul.mubr.f32.gmra.mxu0 %v464
      %v566 = vpop.f32.mrf.mxu0
      %v567 = vadd.f32 0.0, %v566
      %v568 = vpop.f32.mrf.mxu0
      %569 = vmatprep.mubr.f32.mxu0 0.0
      %570 = vmatmul.mubr.f32.gmra.mxu0 %v465
      %v571 = vpop.f32.mrf.mxu0
      %v572 = vadd.f32 0.0, %v571
      %v573 = vpop.f32.mrf.mxu0
      %574 = vmatprep.mubr.f32.mxu0 0.0
      %575 = vmatmul.mubr.f32.gmra.mxu0 %v466
      %v576 = vpop.f32.mrf.mxu0
      %v577 = vadd.f32 0.0, %v576
      %v578 = vpop.f32.mrf.mxu0
      %579 = vmatprep.mubr.f32.mxu0 0.0
      %580 = vmatmul.mubr.f32.gmra.mxu0 %v467
      %v581 = vpop.f32.mrf.mxu0
      %v582 = vadd.f32 0.0, %v581
      %v583 = vpop.f32.mrf.mxu0
      %584 = vmatprep.mubr.f32.mxu0 0.0
      %585 = vmatmul.mubr.f32.gmra.mxu0 %v468
      %v586 = vpop.f32.mrf.mxu0
      %v587 = vadd.f32 0.0, %v586
      %v588 = vpop.f32.mrf.mxu0
      %589 = vdwg.mxu0
      %590 = vst [vmem:[%s200] sm:$0xff] %v552
      %591 = vst [vmem:[%s200 + $0x8] sm:$0xff] %v557
      %592 = vst [vmem:[%s200 + $0x10] sm:$0xff] %v562
      %593 = vst [vmem:[%s200 + $0x18] sm:$0xff] %v567
      %594 = vst [vmem:[%s200 + $0x20] sm:$0xff] %v572
      %595 = vst [vmem:[%s200 + $0x28] sm:$0xff] %v577
      %596 = vst [vmem:[%s200 + $0x30] sm:$0xff] %v582
      %597 = vst [vmem:[%s200 + $0x38] sm:$0xff] %v587
      %s598 = smul.u32 8, %s16
      %p599 = scmp.lt.s32.totalorder %s598, 15
      %s600 = scalar_select %p599, %s598, 15
      %s601 = smul.addr %s600, 8
      %s602 = scalar_lea.vmem %s4, %s601
      // Predicated region
      $region37: #{decoder_forward.1} parent=35 // pred_check
        %p603 = pneg %p123
      $region38: #{decoder_forward.1} parent=35 // pred_check_branch
        %605 = sbr.rel (%p603) target = $region40
      $region39: #{decoder_forward.1} parent=35 // pred_region
        %s606 = smul.u32 8, %s16
      $region40: #{decoder_forward.1} parent=35 // pred_fallthru
        _
    $region36: #{decoder_forward.1} parent=5 // pred_fallthru
      _
    %p607 = scmp.le.s32.totalorder 2, %s11
    // Predicated region
    $region41: #{decoder_forward.1} parent=5 // pred_check
      %p608 = pneg %p607
    $region42: #{decoder_forward.1} parent=5 // pred_check_branch
      %610 = sbr.rel (%p608) target = $region44
    $region43: #{decoder_forward.1} parent=5 // pred_region
      %s611 = ssub.s32 %s11, 2
      // Predicated region
      $region45: #{decoder_forward.1} parent=43 // pred_check
        %p612 = pneg %p129
      $region46: #{decoder_forward.1} parent=43 // pred_check_branch
        %614 = sbr.rel (%p612) target = $region48
      $region47: #{decoder_forward.1} parent=43 // pred_region
        %s615 = smul.u32 8, %s17
        %p616 = scmp.lt.s32.totalorder %s615, 15
        %s617 = scalar_select %p616, %s615, 15
        %s618 = smul.addr %s617, 8
        %s619 = scalar_lea.vmem %s4, %s618
      $region48: #{decoder_forward.1} parent=43 // pred_fallthru
        _
    $region44: #{decoder_forward.1} parent=5 // pred_fallthru
      _
  $region6: #{decoder_forward.1} parent=0 // loop_footer
    %s15 = sadd.s32 1, %s11
  $region7: #{decoder_forward.1} parent=0 // loop_footer_branch
    %10 = sbr.rel target = $region3
  $region8: #{decoder_forward.1} parent=0 // loop_exit
    _

</llo_original>
